<compile_context>
chip_gen: v7x
topology: tpu7x:2x2x1
jax: 0.10.0
libtpu: 0.0.40
codegen_flags: <defaults>
</compile_context>

<pallas_src>
import functools

import jax
import jax.numpy as jnp
from jax import lax
from jax.experimental import pallas as pl
from jax.experimental.pallas import tpu as pltpu


def _round_up(x, m):
    return (x + m - 1) // m * m


def _head_kernel(seg_dims, x_ref, blob_hbm_ref, out_ref, blob_vmem):
    """seg_dims = (k_pad, pos_dim, yaw_dim, pitch_dim, roll_dim).

    x_ref        : (bt, k_pad)      compute_dtype, last real lane carries 1.0
    blob_hbm_ref : (k_pad + C, C)   raw HBM ref (memory_space=pl.ANY)
    out_ref      : (bt, C)          f32 lane-dense output slab
    blob_vmem    : (k_pad + C, C)   single-buffered VMEM copy of the blob
    """
    k_pad, pos_dim, yaw_dim, pitch_dim, roll_dim = seg_dims

    # Load the constant params blob exactly once (grid axis is sequential).
    @pl.when(pl.program_id(0) == 0)
    def _load_params():
        pltpu.sync_copy(blob_hbm_ref, blob_vmem)

    k_tot, cw = blob_vmem.shape
    xa = x_ref[...]                          # (bt, k_pad)
    w1 = blob_vmem[0:k_pad, :]               # (k_pad, C)  fc weight + bias row
    w2 = blob_vmem[k_pad:k_tot, :]           # (C, C)      fused head weights

    # fc: Linear(in, in) + ReLU  (bias folded via the ones-carry column).
    # bf16 MXU inputs, f32 accumulate; ReLU in f32.
    h = jnp.maximum(jnp.dot(xa, w1, preferred_element_type=jnp.float32), 0.0)

    # pos/yaw/pitch/roll heads fused into ONE MXU matmul (+ biases via carry).
    logits = jnp.dot(h.astype(w2.dtype), w2,
                     preferred_element_type=jnp.float32)        # (bt, C) f32

    bt = logits.shape[0]
    lane = lax.broadcasted_iota(jnp.int32, (bt, cw), 1)

    o0 = pos_dim
    o1 = o0 + yaw_dim
    o2 = o1 + pitch_dim
    o3 = o2 + roll_dim

    seg_y = (lane >= o0) & (lane < o1)
    seg_p = (lane >= o1) & (lane < o2)
    seg_r = (lane >= o2) & (lane < o3)
    sm_mask = (lane >= o0) & (lane < o3)

    neg_inf = -jnp.inf

    def seg_max(m):
        return jnp.max(jnp.where(m, logits, neg_inf), axis=1, keepdims=True)

    m_y, m_p, m_r = seg_max(seg_y), seg_max(seg_p), seg_max(seg_r)
    # broadcast per-lane max slab (zeros outside the softmax region)
    m_slab = (jnp.where(seg_y, m_y, 0.0) + jnp.where(seg_p, m_p, 0.0)
              + jnp.where(seg_r, m_r, 0.0))

    # single EUP exp pass over the whole slab; exactly 0 outside the segments
    e = jnp.exp(jnp.where(sm_mask, logits - m_slab, neg_inf))

    def seg_sum(m):
        return jnp.sum(jnp.where(m, e, 0.0), axis=1, keepdims=True)

    s_y, s_p, s_r = seg_sum(seg_y), seg_sum(seg_p), seg_sum(seg_r)
    d_slab = (jnp.where(seg_y, s_y, 0.0) + jnp.where(seg_p, s_p, 0.0)
              + jnp.where(seg_r, s_r, 0.0)
              + jnp.where(sm_mask, 0.0, 1.0))     # avoid 1/0 outside segments

    probs = e * pl.reciprocal(d_slab, approx=True)      # single EUP vrcp

    # pos head = plain linear; orientation heads = softmax; rest = zero pad.
    out_ref[...] = jnp.where(lane < o0, logits, 0.0) + probs


def pack_head_params(params, in_features, pos_hide,
                     pos_dim, yaw_dim, pitch_dim, roll_dim,
                     param_dtype=jnp.bfloat16):
    """Pack all Head params into one blob: [W1_aug (k_pad,C); W_heads_aug (C,C)]."""
    total_out = pos_dim + yaw_dim + pitch_dim + roll_dim
    k_pad = _round_up(in_features + 1, 16)                   # bf16 sublane pack
    c = _round_up(max(in_features + 1, total_out), 128)      # lane aligned

    # fc weight with bias row + ones-carry column
    w1p = jnp.zeros((k_pad, c), jnp.float32)
    w1p = w1p.at[:in_features, :in_features].set(params["w1"])
    w1p = w1p.at[in_features, :in_features].set(params["b1"])
    w1p = w1p.at[in_features, in_features].set(1.0)          # carries "1" into h

    # fused head weights; zero rows guarantee pos sees only the first
    # pos_hide fc features and the orientation heads only the rest.
    o0, o1 = pos_dim, pos_dim + yaw_dim
    o2, o3 = o1 + pitch_dim, total_out
    w2p = jnp.zeros((c, c), jnp.float32)
    w2p = w2p.at[:pos_hide, :o0].set(params["wpos"])
    w2p = w2p.at[pos_hide:in_features, o0:o1].set(params["wyaw"])
    w2p = w2p.at[pos_hide:in_features, o1:o2].set(params["wpitch"])
    w2p = w2p.at[pos_hide:in_features, o2:o3].set(params["wroll"])
    bias_all = jnp.concatenate([params["bpos"], params["byaw"],
                                params["bpitch"], params["broll"]])
    w2p = w2p.at[in_features, :o3].set(bias_all)             # biases via carry lane

    blob = jnp.concatenate([w1p, w2p], axis=0).astype(param_dtype)   # (k_pad+C, C)
    return blob, k_pad, c


def head_forward(x, blob, *, in_features, k_pad, c,
                 pos_dim, yaw_dim, pitch_dim, roll_dim, block_b=1024):
    """x: (B, in_features).  blob: packed params from pack_head_params."""
    B = x.shape[0]
    compute_dtype = blob.dtype
    esize = jnp.dtype(compute_dtype).itemsize

    # rows per grid step: multiple of 16 (bf16 sublane pack; also fine for f32)
    bt = min(block_b, _round_up(max(B, 16), 16))
    bt = _round_up(bt, 16)
    b_pad = _round_up(max(B, bt), bt)
    n_blocks = b_pad // bt

    # augmented input: [x | 1 | 0-pad]  (batch padded to a block multiple)
    xa = jnp.zeros((b_pad, k_pad), compute_dtype)
    xa = xa.at[:B, :in_features].set(x.astype(compute_dtype))
    xa = xa.at[:B, in_features].set(1.0)

    kernel = functools.partial(
        _head_kernel, (k_pad, pos_dim, yaw_dim, pitch_dim, roll_dim))

    # VMEM budget: single-buffered blob scratch + double-buffered x/out tiles.
    blob_bytes = (k_pad + c) * c * esize
    x_bytes = 2 * bt * k_pad * esize
    out_bytes = 2 * bt * c * 4
    vmem_limit = int(min(max(2 * (blob_bytes + x_bytes + out_bytes) + (2 << 20),
                             16 << 20), 100 << 20))

    cost = pl.CostEstimate(
        flops=2 * b_pad * k_pad * c + 2 * b_pad * c * c,
        transcendentals=b_pad * c,
        bytes_accessed=(b_pad * k_pad * esize          # x in
                        + (k_pad + c) * c * esize      # params blob in
                        + b_pad * c * 4))              # out slab back

    out = pl.pallas_call(
        kernel,
        out_shape=jax.ShapeDtypeStruct((b_pad, c), jnp.float32),
        grid=(n_blocks,),
        in_specs=[
            pl.BlockSpec((bt, k_pad), lambda i: (i, 0)),   # batch-row tiles
            pl.BlockSpec(memory_space=pl.ANY),             # params blob (raw HBM)
        ],
        out_specs=pl.BlockSpec((bt, c), lambda i: (i, 0)),
        scratch_shapes=[pltpu.VMEM((k_pad + c, c), compute_dtype)],
        # "arbitrary": the blob is loaded once at program_id==0, so the batch
        # loop must stay sequential on one core.  On v7x, use CORE_PARALLEL
        # plus a per-core first-step blob load to get both TensorCores.
        compiler_params=pltpu.CompilerParams(
            dimension_semantics=("arbitrary",),
            vmem_limit_bytes=vmem_limit),
        cost_estimate=cost,
    )(xa, blob)

    o0 = pos_dim
    o1 = o0 + yaw_dim
    o2 = o1 + pitch_dim
    o3 = o2 + roll_dim
    return (out[:B, :o0], out[:B, o0:o1], out[:B, o1:o2], out[:B, o2:o3])


def init_params(key, in_features, pos_dim, yaw_dim, pitch_dim, roll_dim):
    pos_hide = int(in_features * 0.2)
    ori_hide = in_features - pos_hide
    ks = jax.random.split(key, 10)

    def lin(kw, kb, fan_in, fan_out):
        # weight stored transposed: (in, out); bias: (out,)
        w = 0.1 * jax.random.normal(kw, (fan_in, fan_out), jnp.float32)
        b = 0.1 * jax.random.normal(kb, (fan_out,), jnp.float32)
        return w, b

    w1, b1 = lin(ks[0], ks[1], in_features, in_features)
    wpos, bpos = lin(ks[2], ks[3], pos_hide, pos_dim)
    wyaw, byaw = lin(ks[4], ks[5], ori_hide, yaw_dim)
    wpitch, bpitch = lin(ks[6], ks[7], ori_hide, pitch_dim)
    wroll, broll = lin(ks[8], ks[9], ori_hide, roll_dim)

    params = dict(w1=w1, b1=b1, wpos=wpos, bpos=bpos, wyaw=wyaw, byaw=byaw,
                  wpitch=wpitch, bpitch=bpitch, wroll=wroll, broll=broll)
    return params, pos_hide


def reference_forward(x, params, pos_hide):
    h = jnp.maximum(x @ params["w1"] + params["b1"], 0.0)
    pos_feat, ori_feat = h[:, :pos_hide], h[:, pos_hide:]
    pos = pos_feat @ params["wpos"] + params["bpos"]

    def sm(w, b):
        return jax.nn.softmax(ori_feat @ w + b, axis=1)

    return (pos,
            sm(params["wyaw"], params["byaw"]),
            sm(params["wpitch"], params["bpitch"]),
            sm(params["wroll"], params["broll"]))


if __name__ == "__main__":
    in_features = 32            # pos_hide = 6, ori_hide = 26
    pos_dim, yaw_dim, pitch_dim, roll_dim = 3, 12, 12, 12

    key = jax.random.PRNGKey(0)
    kx1, kx2, kp = jax.random.split(key, 3)
    params, pos_hide = init_params(kp, in_features, pos_dim, yaw_dim,
                                   pitch_dim, roll_dim)

    # ---- check 1: f32 params, tiny batch (tight tolerance; exercises padding)
    x1 = jax.random.normal(kx1, (2, in_features), jnp.float32)
    blob32, k_pad, c = pack_head_params(params, in_features, pos_hide,
                                        pos_dim, yaw_dim, pitch_dim, roll_dim,
                                        param_dtype=jnp.float32)
    outs1 = jax.block_until_ready(head_forward(
        x1, blob32, in_features=in_features, k_pad=k_pad, c=c,
        pos_dim=pos_dim, yaw_dim=yaw_dim, pitch_dim=pitch_dim,
        roll_dim=roll_dim))
    refs1 = reference_forward(x1, params, pos_hide)
    for o, r in zip(outs1, refs1):
        assert o.shape == r.shape, (o.shape, r.shape)
        # approx=True reciprocal (EUP vrcp) -> 2e-3 tolerance.
        assert jnp.allclose(o, r, atol=2e-3, rtol=2e-3), \
            float(jnp.max(jnp.abs(o - r)))

    # ---- check 2: bf16 params, multi-block batch (main perf configuration)
    B2 = 300                     # pads to 384 -> 3 grid steps at block_b=128
    x2 = jax.random.normal(kx2, (B2, in_features), jnp.float32)
    blob16, k_pad, c = pack_head_params(params, in_features, pos_hide,
                                        pos_dim, yaw_dim, pitch_dim, roll_dim,
                                        param_dtype=jnp.bfloat16)
    outs2 = jax.block_until_ready(head_forward(
        x2, blob16, in_features=in_features, k_pad=k_pad, c=c,
        pos_dim=pos_dim, yaw_dim=yaw_dim, pitch_dim=pitch_dim,
        roll_dim=roll_dim, block_b=128))
    refs2 = reference_forward(x2, params, pos_hide)
    for o, r in zip(outs2, refs2):
        assert o.shape == r.shape, (o.shape, r.shape)
        # bf16 MXU inputs -> looser tolerance vs f32 reference.
        assert jnp.allclose(o, r, atol=2e-2, rtol=2e-2), \
            float(jnp.max(jnp.abs(o - r)))

    print("KERNEL_OK")
</pallas_src>

<mosaic_0001>
module attributes {stable_mosaic.version = 11 : i64} {
  func.func @_head_kernel(%arg0: i32, %arg1: memref<16x48xf32, #tpu.memory_space<vmem>>, %arg2: memref<176x128xf32, #tpu.memory_space<any>>, %arg3: memref<16x128xf32, #tpu.memory_space<vmem>>, %arg4: memref<176x128xf32, #tpu.memory_space<vmem>>) attributes {dimension_semantics = [#tpu.dimension_semantics<arbitrary>], iteration_bounds = array<i64: 1>, scalar_prefetch = 0 : i64, scratch_operands = 1 : i64, tpu.core_type = #tpu.core_type<tc>, window_params = [{transform_indices = @transform_0, window_bounds = array<i64: 16, 48>}, {}, {transform_indices = @transform_2, window_bounds = array<i64: 16, 128>}]} {
    %c0_i32 = arith.constant 0 : i32
    %0 = arith.cmpi eq, %arg0, %c0_i32 : i32
    %1 = arith.extui %0 : i1 to i32
    %c0_i32_0 = arith.constant 0 : i32
    %2 = arith.cmpi ne, %1, %c0_i32_0 : i32
    scf.if %2 {
      "tpu.region"() ({
        %99 = tpu.sem_alloc : memref<!tpu.dma_semaphore, #tpu.memory_space<semaphore_mem>>
        tpu.enqueue_dma source(%arg2 : memref<176x128xf32, #tpu.memory_space<any>>) target(%arg4 : memref<176x128xf32, #tpu.memory_space<vmem>>) target_semaphore(%99 : memref<!tpu.dma_semaphore, #tpu.memory_space<semaphore_mem>>)
        tpu.wait_dma2 semaphore(%99 : memref<!tpu.dma_semaphore, #tpu.memory_space<semaphore_mem>>) src(%arg2 : memref<176x128xf32, #tpu.memory_space<any>>) dst(%arg4 : memref<176x128xf32, #tpu.memory_space<vmem>>)
        tpu.yield
      }) : () -> ()
    } else {
    }
    %c0 = arith.constant 0 : index
    %c0_1 = arith.constant 0 : index
    %3 = vector.load %arg1[%c0, %c0_1] : memref<16x48xf32, #tpu.memory_space<vmem>>, vector<16x48xf32>
    %c0_2 = arith.constant 0 : index
    %c0_3 = arith.constant 0 : index
    %4 = vector.load %arg4[%c0_2, %c0_3] : memref<176x128xf32, #tpu.memory_space<vmem>>, vector<48x128xf32>
    %c48 = arith.constant 48 : index
    %c0_4 = arith.constant 0 : index
    %5 = vector.load %arg4[%c48, %c0_4] : memref<176x128xf32, #tpu.memory_space<vmem>>, vector<128x128xf32>
    %cst = arith.constant dense<0.000000e+00> : vector<16x128xf32>
    %6 = tpu.matmul %3, %4, %cst {dimension_numbers = #tpu.dot_dimension_numbers<[1], [0], [0], [1], [0, 0, 1, 1], [], []>} : vector<16x48xf32>, vector<48x128xf32>, vector<16x128xf32> -> vector<16x128xf32>
    %cst_5 = arith.constant 0.000000e+00 : f32
    %7 = vector.broadcast %cst_5 : f32 to vector<16x128xf32>
    %8 = arith.maximumf %6, %7 : vector<16x128xf32>
    %cst_6 = arith.constant dense<0.000000e+00> : vector<16x128xf32>
    %9 = tpu.matmul %8, %5, %cst_6 {dimension_numbers = #tpu.dot_dimension_numbers<[1], [0], [0], [1], [0, 0, 1, 1], [], []>} : vector<16x128xf32>, vector<128x128xf32>, vector<16x128xf32> -> vector<16x128xf32>
    %10 = tpu.iota {dimensions = array<i32: 1>} : vector<16x128xi32>
    %c3_i32 = arith.constant 3 : i32
    %11 = vector.broadcast %c3_i32 : i32 to vector<16x128xi32>
    %12 = arith.cmpi sge, %10, %11 : vector<16x128xi32>
    %c15_i32 = arith.constant 15 : i32
    %13 = vector.broadcast %c15_i32 : i32 to vector<16x128xi32>
    %14 = arith.cmpi slt, %10, %13 : vector<16x128xi32>
    %15 = arith.andi %12, %14 : vector<16x128xi1>
    %c15_i32_7 = arith.constant 15 : i32
    %16 = vector.broadcast %c15_i32_7 : i32 to vector<16x128xi32>
    %17 = arith.cmpi sge, %10, %16 : vector<16x128xi32>
    %c27_i32 = arith.constant 27 : i32
    %18 = vector.broadcast %c27_i32 : i32 to vector<16x128xi32>
    %19 = arith.cmpi slt, %10, %18 : vector<16x128xi32>
    %20 = arith.andi %17, %19 : vector<16x128xi1>
    %c27_i32_8 = arith.constant 27 : i32
    %21 = vector.broadcast %c27_i32_8 : i32 to vector<16x128xi32>
    %22 = arith.cmpi sge, %10, %21 : vector<16x128xi32>
    %c39_i32 = arith.constant 39 : i32
    %23 = vector.broadcast %c39_i32 : i32 to vector<16x128xi32>
    %24 = arith.cmpi slt, %10, %23 : vector<16x128xi32>
    %25 = arith.andi %22, %24 : vector<16x128xi1>
    %c3_i32_9 = arith.constant 3 : i32
    %26 = vector.broadcast %c3_i32_9 : i32 to vector<16x128xi32>
    %27 = arith.cmpi sge, %10, %26 : vector<16x128xi32>
    %c39_i32_10 = arith.constant 39 : i32
    %28 = vector.broadcast %c39_i32_10 : i32 to vector<16x128xi32>
    %29 = arith.cmpi slt, %10, %28 : vector<16x128xi32>
    %30 = arith.andi %27, %29 : vector<16x128xi1>
    %cst_11 = arith.constant 0xFF800000 : f32
    %31 = vector.broadcast %cst_11 : f32 to vector<16x128xf32>
    %32 = arith.select %15, %9, %31 : vector<16x128xi1>, vector<16x128xf32>
    %cst_12 = arith.constant dense<0xFF800000> : vector<16xf32>
    %33 = vector.multi_reduction <maximumf>, %32, %cst_12 [1] : vector<16x128xf32> to vector<16xf32>
    %34 = vector.shape_cast %33 : vector<16xf32> to vector<16x1xf32>
    %cst_13 = arith.constant 0xFF800000 : f32
    %35 = vector.broadcast %cst_13 : f32 to vector<16x128xf32>
    %36 = arith.select %20, %9, %35 : vector<16x128xi1>, vector<16x128xf32>
    %cst_14 = arith.constant dense<0xFF800000> : vector<16xf32>
    %37 = vector.multi_reduction <maximumf>, %36, %cst_14 [1] : vector<16x128xf32> to vector<16xf32>
    %38 = vector.shape_cast %37 : vector<16xf32> to vector<16x1xf32>
    %cst_15 = arith.constant 0xFF800000 : f32
    %39 = vector.broadcast %cst_15 : f32 to vector<16x128xf32>
    %40 = arith.select %25, %9, %39 : vector<16x128xi1>, vector<16x128xf32>
    %cst_16 = arith.constant dense<0xFF800000> : vector<16xf32>
    %41 = vector.multi_reduction <maximumf>, %40, %cst_16 [1] : vector<16x128xf32> to vector<16xf32>
    %42 = vector.shape_cast %41 : vector<16xf32> to vector<16x1xf32>
    %cst_17 = arith.constant 0.000000e+00 : f32
    %43 = vector.shape_cast %34 : vector<16x1xf32> to vector<16x1xf32>
    %44 = vector.broadcast %43 : vector<16x1xf32> to vector<16x128xf32>
    %45 = vector.broadcast %cst_17 : f32 to vector<16x128xf32>
    %46 = arith.select %15, %44, %45 : vector<16x128xi1>, vector<16x128xf32>
    %cst_18 = arith.constant 0.000000e+00 : f32
    %47 = vector.shape_cast %38 : vector<16x1xf32> to vector<16x1xf32>
    %48 = vector.broadcast %47 : vector<16x1xf32> to vector<16x128xf32>
    %49 = vector.broadcast %cst_18 : f32 to vector<16x128xf32>
    %50 = arith.select %20, %48, %49 : vector<16x128xi1>, vector<16x128xf32>
    %51 = arith.addf %46, %50 : vector<16x128xf32>
    %cst_19 = arith.constant 0.000000e+00 : f32
    %52 = vector.shape_cast %42 : vector<16x1xf32> to vector<16x1xf32>
    %53 = vector.broadcast %52 : vector<16x1xf32> to vector<16x128xf32>
    %54 = vector.broadcast %cst_19 : f32 to vector<16x128xf32>
    %55 = arith.select %25, %53, %54 : vector<16x128xi1>, vector<16x128xf32>
    %56 = arith.addf %51, %55 : vector<16x128xf32>
    %57 = arith.subf %9, %56 : vector<16x128xf32>
    %cst_20 = arith.constant 0xFF800000 : f32
    %58 = vector.broadcast %cst_20 : f32 to vector<16x128xf32>
    %59 = arith.select %30, %57, %58 : vector<16x128xi1>, vector<16x128xf32>
    %60 = math.exp %59 : vector<16x128xf32>
    %cst_21 = arith.constant 0.000000e+00 : f32
    %61 = vector.broadcast %cst_21 : f32 to vector<16x128xf32>
    %62 = arith.select %15, %60, %61 : vector<16x128xi1>, vector<16x128xf32>
    %cst_22 = arith.constant dense<0.000000e+00> : vector<16xf32>
    %63 = vector.multi_reduction <add>, %62, %cst_22 [1] : vector<16x128xf32> to vector<16xf32>
    %64 = vector.shape_cast %63 : vector<16xf32> to vector<16x1xf32>
    %cst_23 = arith.constant 0.000000e+00 : f32
    %65 = vector.broadcast %cst_23 : f32 to vector<16x128xf32>
    %66 = arith.select %20, %60, %65 : vector<16x128xi1>, vector<16x128xf32>
    %cst_24 = arith.constant dense<0.000000e+00> : vector<16xf32>
    %67 = vector.multi_reduction <add>, %66, %cst_24 [1] : vector<16x128xf32> to vector<16xf32>
    %68 = vector.shape_cast %67 : vector<16xf32> to vector<16x1xf32>
    %cst_25 = arith.constant 0.000000e+00 : f32
    %69 = vector.broadcast %cst_25 : f32 to vector<16x128xf32>
    %70 = arith.select %25, %60, %69 : vector<16x128xi1>, vector<16x128xf32>
    %cst_26 = arith.constant dense<0.000000e+00> : vector<16xf32>
    %71 = vector.multi_reduction <add>, %70, %cst_26 [1] : vector<16x128xf32> to vector<16xf32>
    %72 = vector.shape_cast %71 : vector<16xf32> to vector<16x1xf32>
    %cst_27 = arith.constant 0.000000e+00 : f32
    %73 = vector.shape_cast %64 : vector<16x1xf32> to vector<16x1xf32>
    %74 = vector.broadcast %73 : vector<16x1xf32> to vector<16x128xf32>
    %75 = vector.broadcast %cst_27 : f32 to vector<16x128xf32>
    %76 = arith.select %15, %74, %75 : vector<16x128xi1>, vector<16x128xf32>
    %cst_28 = arith.constant 0.000000e+00 : f32
    %77 = vector.shape_cast %68 : vector<16x1xf32> to vector<16x1xf32>
    %78 = vector.broadcast %77 : vector<16x1xf32> to vector<16x128xf32>
    %79 = vector.broadcast %cst_28 : f32 to vector<16x128xf32>
    %80 = arith.select %20, %78, %79 : vector<16x128xi1>, vector<16x128xf32>
    %81 = arith.addf %76, %80 : vector<16x128xf32>
    %cst_29 = arith.constant 0.000000e+00 : f32
    %82 = vector.shape_cast %72 : vector<16x1xf32> to vector<16x1xf32>
    %83 = vector.broadcast %82 : vector<16x1xf32> to vector<16x128xf32>
    %84 = vector.broadcast %cst_29 : f32 to vector<16x128xf32>
    %85 = arith.select %25, %83, %84 : vector<16x128xi1>, vector<16x128xf32>
    %86 = arith.addf %81, %85 : vector<16x128xf32>
    %cst_30 = arith.constant 0.000000e+00 : f32
    %cst_31 = arith.constant 1.000000e+00 : f32
    %87 = vector.broadcast %cst_30 : f32 to vector<16x128xf32>
    %88 = vector.broadcast %cst_31 : f32 to vector<16x128xf32>
    %89 = arith.select %30, %87, %88 : vector<16x128xi1>, vector<16x128xf32>
    %90 = arith.addf %86, %89 : vector<16x128xf32>
    %91 = tpu.reciprocal %90 {approx = true} : vector<16x128xf32> -> vector<16x128xf32>
    %92 = arith.mulf %60, %91 : vector<16x128xf32>
    %c3_i32_32 = arith.constant 3 : i32
    %93 = vector.broadcast %c3_i32_32 : i32 to vector<16x128xi32>
    %94 = arith.cmpi slt, %10, %93 : vector<16x128xi32>
    %cst_33 = arith.constant 0.000000e+00 : f32
    %95 = vector.broadcast %cst_33 : f32 to vector<16x128xf32>
    %96 = arith.select %94, %9, %95 : vector<16x128xi1>, vector<16x128xf32>
    %97 = arith.addf %96, %92 : vector<16x128xf32>
    %c0_34 = arith.constant 0 : index
    %c0_35 = arith.constant 0 : index
    %98 = vector.load %arg3[%c0_34, %c0_35] : memref<16x128xf32, #tpu.memory_space<vmem>>, vector<16x128xf32>
    tpu.vector_store %arg3[%c0_34, %c0_35], %97 {strides = array<i32>} : memref<16x128xf32, #tpu.memory_space<vmem>>, vector<16x128xf32>,
    return
  }
  func.func @transform_0(%arg0: i32) -> (i32, i32) {
    %c0_i32 = arith.constant 0 : i32
    %c0_i32_0 = arith.constant 0 : i32
    return %arg0, %c0_i32 : i32, i32
  }
  func.func @transform_2(%arg0: i32) -> (i32, i32) {
    %c0_i32 = arith.constant 0 : i32
    %c0_i32_0 = arith.constant 0 : i32
    return %arg0, %c0_i32 : i32, i32
  }
}

</mosaic_0001>

<llo_original>
// kernel: tpu_custom_call.1
$region0: #{tpu_custom_call.1}
  #allocation0 [shape = 'u32[]', space=smem, size = 0x4, offset = 0x4, fixed_abs, tag = 'smem constant byte address 0x4 - core index']
  #allocation1 [shape = 'u32[144,128]{1,0:T(1,128)}', space=vmem, size = 0x12000, scoped, tag = 'internal scratch']
  #allocation2 [shape = 'f32[176,128]{1,0:T(8,128)}', space=vmem, size = 0x16000, scoped, tag = 'scratch operand']
  #allocation8 [shape = 's32[]', space=sflag, size = 0x4, offset = 0, fixed_abs, tag = 'sflag constant byte address 0x0 - dummy sync flag']
  #allocation9 [shape = 's32[]', space=sflag, size = 0x4, offset = 0, fixed_abs, tag = 'sflag constant byte address 0x0 - dummy sync flag']
  #allocation10 [shape = 'u32[]', space=smem, size = 0x4, offset = 0x44, fixed_abs, tag = 'smem constant byte address 0x44 - assertion arg 0']
  #allocation11 [shape = 'u32[]', space=smem, size = 0x4, offset = 0x48, fixed_abs, tag = 'smem constant byte address 0x48 - assertion arg 1']
  %s0 = inlined_call_operand.hbm [shape: f32[16,48], index: 0, kind: input, shape index: {}]
  %s1 = inlined_call_operand.hbm [shape: f32[176,128], index: 1, kind: input, shape index: {}]
  %s2 = inlined_call_operand.hbm [shape: f32[16,128], index: 2, kind: output, shape index: {}]
  %s3 = sld [smem:[#allocation0]]
  $region27: #{tpu_custom_call.1} parent=0
    _
  %s5 = ssub.s32 1, %s3
  %s6 = scalar_select 0, %s5, %s3
  $region1: #{tpu_custom_call.1} parent=0
    #allocation3 [shape = 'u8[8192]{0}', space=vmem, size = 0x2000, scoped, tag = 'input window, operand 0, single buffered']
    #allocation4 [shape = 's32[1]{0}', space=sflag, size = 0x4, scoped, tag = 'scoped memory for tpu_custom_call.1']
    #allocation5 [shape = 's32[1]{0}', space=sflag, size = 0x4, scoped, tag = 'scoped memory for tpu_custom_call.1']
    #allocation6 [shape = 'u8[8192]{0}', space=vmem, size = 0x2000, scoped, tag = 'output window, operand 0, single buffered']
    %7 = vsyncpa [#allocation4], 0
    %8 = vsyncpa [#allocation5], 0
    // Predicated region
    $region2: #{tpu_custom_call.1} parent=1 // pred_check
      _
    $region3: #{tpu_custom_call.1} parent=1 // pred_check_branch
      %10 = sbr.rel (0) target = $region5
    $region4: #{tpu_custom_call.1} parent=1 // pred_region
      %s12 = ssub.s32 256, 256
      %13 = vsyncadd [#allocation4], %s12
      %s14 = sshll.u32 [#allocation3], 4
      %s15 = int_to_ptr.vmem [resolvable:$true] %s14
      %20 = dma.hbm_to_vmem [thread:$0]  %s0, 256, %s15, [#allocation4], 128, 128, 8
    $region5: #{tpu_custom_call.1} parent=1 // pred_fallthru
      _
    // Predicated region
    $region6: #{tpu_custom_call.1} parent=1 // pred_check
      _
    $region7: #{tpu_custom_call.1} parent=1 // pred_check_branch
      %22 = sbr.rel (0) target = $region9
    $region8: #{tpu_custom_call.1} parent=1 // pred_region
      %23 = dma.done [#allocation4], 256
    $region9: #{tpu_custom_call.1} parent=1 // pred_fallthru
      _
    %p24 = scmp.eq.s32.totalorder 0, 0
    // Predicated region
    $region10: #{tpu_custom_call.1} parent=1 // pred_check
      %p25 = pneg %p24
    $region11: #{tpu_custom_call.1} parent=1 // pred_check_branch
      %27 = sbr.rel (%p25) target = $region13
    $region12: #{tpu_custom_call.1} parent=1 // pred_region
      $region14: #{tpu_custom_call.1} parent=12
        #allocation7 [shape = 's32[1]{0}', space=sflag, size = 0x4, scoped, tag = 'scoped memory for tpu_custom_call.1']
        // Predicated region
        $region15: #{tpu_custom_call.1} parent=14 // pred_check
          _
        $region16: #{tpu_custom_call.1} parent=14 // pred_check_branch
          %29 = sbr.rel target = $region18
        $region17: #{tpu_custom_call.1} parent=14 // pred_region
          %30 = sst [smem:[#allocation10]] [#allocation9]
          %31 = sst [smem:[#allocation11]] [#allocation8]
        $region18: #{tpu_custom_call.1} parent=14 // pred_fallthru
          _
        %33 = shalt.err (0)
        %s35 = sshll.u32 [#allocation2], 4
        %s36 = int_to_ptr.vmem [resolvable:$true] %s35
        %38 = dma.hbm_to_vmem [thread:$0]  %s1, 2816, %s36, [#allocation7]
        %s39 = smul.u32 176, 1
        %s40 = sshll.u32 %s39, 4
        %41 = dma.done [#allocation7], %s40
    $region13: #{tpu_custom_call.1} parent=1 // pred_fallthru
      _
    %v42 = vld [vmem:[#allocation3] sm:$0xff]
    %v43 = vld [vmem:[#allocation3 + $0x8] sm:$0xff]
    %v44 = vld [vmem:[#allocation2] sm:$0xff]
    %v45 = vld [vmem:[#allocation2 + $0x8] sm:$0xff]
    %v46 = vld [vmem:[#allocation2 + $0x10] sm:$0xff]
    %v47 = vld [vmem:[#allocation2 + $0x18] sm:$0xff]
    %v48 = vld [vmem:[#allocation2 + $0x20] sm:$0xff]
    %v49 = vld [vmem:[#allocation2 + $0x28] sm:$0xff]
    %v50 = vld [vmem:[#allocation2 + $0x30] sm:$0xff]
    %v51 = vld [vmem:[#allocation2 + $0x38] sm:$0xff]
    %v52 = vld [vmem:[#allocation2 + $0x40] sm:$0xff]
    %v53 = vld [vmem:[#allocation2 + $0x48] sm:$0xff]
    %v54 = vld [vmem:[#allocation2 + $0x50] sm:$0xff]
    %v55 = vld [vmem:[#allocation2 + $0x58] sm:$0xff]
    %v56 = vld [vmem:[#allocation2 + $0x60] sm:$0xff]
    %v57 = vld [vmem:[#allocation2 + $0x68] sm:$0xff]
    %v58 = vld [vmem:[#allocation2 + $0x70] sm:$0xff]
    %v59 = vld [vmem:[#allocation2 + $0x78] sm:$0xff]
    %v60 = vld [vmem:[#allocation2 + $0x80] sm:$0xff]
    %v61 = vld [vmem:[#allocation2 + $0x88] sm:$0xff]
    %v62 = vld [vmem:[#allocation2 + $0x90] sm:$0xff]
    %v63 = vld [vmem:[#allocation2 + $0x98] sm:$0xff]
    %v64 = vld [vmem:[#allocation2 + $0xa0] sm:$0xff]
    %v65 = vld [vmem:[#allocation2 + $0xa8] sm:$0xff]
    %vm66 = vcmask 392192
    %v68 = vsel %vm66, %v42, 0
    %v71 = vsel %vm66, %v43, 0
    %73 = vmatprep.subr.mxu0 0.0
    %74 = vmatpush1.msra.mxu0 %v44
    %75 = vmatprep.subr.mxu0 0.0
    %76 = vmatpush1.msra.mxu0 %v45
    %77 = vmatprep.subr.mxu0 0.0
    %78 = vmatpush1.msra.mxu0 %v46
    %79 = vmatprep.subr.mxu0 0.0
    %80 = vmatpush1.msra.mxu0 %v47
    %81 = vmatprep.subr.mxu0 0.0
    %82 = vmatpush1.msra.mxu0 %v48
    %83 = vmatprep.subr.mxu0 0.0
    %84 = vmatpush1.msra.mxu0 %v49
    %85 = vmatprep.subr.mxu0 0.0
    %86 = vmatpush1.msra.mxu0 0.0
    %87 = vmatprep.subr.mxu0 0.0
    %88 = vmatpush1.msra.mxu0 0.0
    %89 = vmatprep.subr.mxu0 0.0
    %90 = vmatpush1.msra.mxu0 0.0
    %91 = vmatprep.subr.mxu0 0.0
    %92 = vmatpush1.msra.mxu0 0.0
    %93 = vmatprep.subr.mxu0 0.0
    %94 = vmatpush1.msra.mxu0 0.0
    %95 = vmatprep.subr.mxu0 0.0
    %96 = vmatpush1.msra.mxu0 0.0
    %97 = vmatprep.subr.mxu0 0.0
    %98 = vmatpush1.msra.mxu0 0.0
    %99 = vmatprep.subr.mxu0 0.0
    %100 = vmatpush1.msra.mxu0 0.0
    %101 = vmatprep.subr.mxu0 0.0
    %102 = vmatpush1.msra.mxu0 0.0
    %103 = vmatprep.subr.mxu0 0.0
    %104 = vmatpush1.msra.mxu0 0.0
    %105 = vmatprep.subr.mxu0 0.0
    %106 = vmatpush1.msra.mxu0 0.0
    %107 = vmatprep.subr.mxu0 0.0
    %108 = vmatpush1.msra.mxu0 0.0
    %109 = vmatprep.subr.mxu0 0.0
    %110 = vmatpush1.msra.mxu0 0.0
    %111 = vmatprep.subr.mxu0 0.0
    %112 = vmatpush1.msra.mxu0 0.0
    %113 = vmatprep.subr.mxu0 0.0
    %114 = vmatpush1.msra.mxu0 0.0
    %115 = vmatprep.subr.mxu0 0.0
    %116 = vmatpush1.msra.mxu0 0.0
    %117 = vmatprep.subr.mxu0 0.0
    %118 = vmatpush1.msra.mxu0 0.0
    %119 = vmatprep.subr.mxu0 0.0
    %120 = vmatpush1.msra.mxu0 0.0
    %121 = vmatprep.subr.mxu0 0.0
    %122 = vmatpush1.msra.mxu0 0.0
    %123 = vmatprep.subr.mxu0 0.0
    %124 = vmatpush1.msra.mxu0 0.0
    %125 = vmatprep.subr.mxu0 0.0
    %126 = vmatpush1.msra.mxu0 0.0
    %127 = vmatprep.subr.mxu0 0.0
    %128 = vmatpush1.msra.mxu0 0.0
    %129 = vmatprep.subr.mxu0 0.0
    %130 = vmatpush1.msra.mxu0 0.0
    %131 = vmatprep.subr.mxu0 0.0
    %132 = vmatpush1.msra.mxu0 0.0
    %133 = vmatprep.subr.mxu0 0.0
    %134 = vmatpush1.msra.mxu0 0.0
    %135 = vmatprep.subr.mxu0 0.0
    %136 = vmatpush1.msra.mxu0 0.0
    %137 = vmatprep.mubr.f32.mxu0 0.0
    %138 = vmatmul.mubr.f32.gmra.mrb[0].mxu0 %v68
    %v139 = vpop.f32.mrb[0].mxu0
    %v140 = vadd.f32 0.0, %v139
    %v141 = vpop.f32.mrb[0].mxu0
    %142 = vmatprep.mubr.f32.mxu0 0.0
    %143 = vmatmul.mubr.f32.gmra.mrb[0].mxu0 %v71
    %v144 = vpop.f32.mrb[0].mxu0
    %v145 = vadd.f32 0.0, %v144
    %v146 = vpop.f32.mrb[0].mxu0
    %147 = vdwg.mxu0
    %v148 = vmax.f32 %v140, 0.0
    %v149 = vmax.f32 %v145, 0.0
    %150 = vmatprep.subr.mxu0 0.0
    %151 = vmatpush1.msra.mxu0 %v50
    %152 = vmatprep.subr.mxu0 0.0
    %153 = vmatpush1.msra.mxu0 %v51
    %154 = vmatprep.subr.mxu0 0.0
    %155 = vmatpush1.msra.mxu0 %v52
    %156 = vmatprep.subr.mxu0 0.0
    %157 = vmatpush1.msra.mxu0 %v53
    %158 = vmatprep.subr.mxu0 0.0
    %159 = vmatpush1.msra.mxu0 %v54
    %160 = vmatprep.subr.mxu0 0.0
    %161 = vmatpush1.msra.mxu0 %v55
    %162 = vmatprep.subr.mxu0 0.0
    %163 = vmatpush1.msra.mxu0 %v56
    %164 = vmatprep.subr.mxu0 0.0
    %165 = vmatpush1.msra.mxu0 %v57
    %166 = vmatprep.subr.mxu0 0.0
    %167 = vmatpush1.msra.mxu0 %v58
    %168 = vmatprep.subr.mxu0 0.0
    %169 = vmatpush1.msra.mxu0 %v59
    %170 = vmatprep.subr.mxu0 0.0
    %171 = vmatpush1.msra.mxu0 %v60
    %172 = vmatprep.subr.mxu0 0.0
    %173 = vmatpush1.msra.mxu0 %v61
    %174 = vmatprep.subr.mxu0 0.0
    %175 = vmatpush1.msra.mxu0 %v62
    %176 = vmatprep.subr.mxu0 0.0
    %177 = vmatpush1.msra.mxu0 %v63
    %178 = vmatprep.subr.mxu0 0.0
    %179 = vmatpush1.msra.mxu0 %v64
    %180 = vmatprep.subr.mxu0 0.0
    %181 = vmatpush1.msra.mxu0 %v65
    %182 = vmatprep.subr.mxu0 0.0
    %183 = vmatpush1.msra.mxu0 0.0
    %184 = vmatprep.subr.mxu0 0.0
    %185 = vmatpush1.msra.mxu0 0.0
    %186 = vmatprep.subr.mxu0 0.0
    %187 = vmatpush1.msra.mxu0 0.0
    %188 = vmatprep.subr.mxu0 0.0
    %189 = vmatpush1.msra.mxu0 0.0
    %190 = vmatprep.subr.mxu0 0.0
    %191 = vmatpush1.msra.mxu0 0.0
    %192 = vmatprep.subr.mxu0 0.0
    %193 = vmatpush1.msra.mxu0 0.0
    %194 = vmatprep.subr.mxu0 0.0
    %195 = vmatpush1.msra.mxu0 0.0
    %196 = vmatprep.subr.mxu0 0.0
    %197 = vmatpush1.msra.mxu0 0.0
    %198 = vmatprep.subr.mxu0 0.0
    %199 = vmatpush1.msra.mxu0 0.0
    %200 = vmatprep.subr.mxu0 0.0
    %201 = vmatpush1.msra.mxu0 0.0
    %202 = vmatprep.subr.mxu0 0.0
    %203 = vmatpush1.msra.mxu0 0.0
    %204 = vmatprep.subr.mxu0 0.0
    %205 = vmatpush1.msra.mxu0 0.0
    %206 = vmatprep.subr.mxu0 0.0
    %207 = vmatpush1.msra.mxu0 0.0
    %208 = vmatprep.subr.mxu0 0.0
    %209 = vmatpush1.msra.mxu0 0.0
    %210 = vmatprep.subr.mxu0 0.0
    %211 = vmatpush1.msra.mxu0 0.0
    %212 = vmatprep.subr.mxu0 0.0
    %213 = vmatpush1.msra.mxu0 0.0
    %214 = vmatprep.mubr.f32.mxu0 0.0
    %215 = vmatmul.mubr.f32.gmra.mrb[0].mxu0 %v148
    %v216 = vpop.f32.mrb[0].mxu0
    %v217 = vadd.f32 0.0, %v216
    %v218 = vpop.f32.mrb[0].mxu0
    %219 = vmatprep.mubr.f32.mxu0 0.0
    %220 = vmatmul.mubr.f32.gmra.mrb[0].mxu0 %v149
    %v221 = vpop.f32.mrb[0].mxu0
    %v222 = vadd.f32 0.0, %v221
    %v223 = vpop.f32.mrb[0].mxu0
    %224 = vdwg.mxu0
    %v225 = vlaneseq
    %v226 = vand.u32 %v225, 127
    %vm227 = vcmp.ge.s32.totalorder %v226, 3
    %vm228 = vcmp.lt.s32.totalorder %v226, 15
    %vm229 = vmand %vm227, %vm228
    %vm230 = vcmp.ge.s32.totalorder %v226, 15
    %vm231 = vcmp.lt.s32.totalorder %v226, 27
    %vm232 = vmand %vm230, %vm231
    %vm233 = vcmp.ge.s32.totalorder %v226, 27
    %vm234 = vcmp.lt.s32.totalorder %v226, 39
    %vm235 = vmand %vm233, %vm234
    %vm236 = vmand %vm227, %vm234
    %v237 = vsel %vm229, %v217, -inf
    %v238 = vsel %vm229, %v222, -inf
    %239 = vmax.xlane.f32.xlu0 %v237
    %v240 = vpop.xlane.xlu0 %239
    %241 = vmax.xlane.f32.xlu0 %v238
    %v242 = vpop.xlane.xlu0 %241
    %v243 = vsel %vm232, %v217, -inf
    %v244 = vsel %vm232, %v222, -inf
    %245 = vmax.xlane.f32.xlu0 %v243
    %v246 = vpop.xlane.xlu0 %245
    %247 = vmax.xlane.f32.xlu0 %v244
    %v248 = vpop.xlane.xlu0 %247
    %v249 = vsel %vm235, %v217, -inf
    %v250 = vsel %vm235, %v222, -inf
    %251 = vmax.xlane.f32.xlu0 %v249
    %v252 = vpop.xlane.xlu0 %251
    %253 = vmax.xlane.f32.xlu0 %v250
    %v254 = vpop.xlane.xlu0 %253
    %v255 = vsel %vm229, %v240, 0.0
    %v256 = vsel %vm229, %v242, 0.0
    %v257 = vsel %vm232, %v246, 0.0
    %v258 = vsel %vm232, %v248, 0.0
    %v259 = vadd.f32 %v255, %v257
    %v260 = vadd.f32 %v256, %v258
    %v261 = vsel %vm235, %v252, 0.0
    %v262 = vsel %vm235, %v254, 0.0
    %v263 = vadd.f32 %v259, %v261
    %v264 = vadd.f32 %v260, %v262
    %v265 = vsub.f32 %v217, %v263
    %v266 = vsub.f32 %v222, %v264
    %v267 = vsel %vm236, %v265, -inf
    %v268 = vsel %vm236, %v266, -inf
    %v269 = vmul.f32 %v267, 1.442695
    %v270 = vpow.pop %v269
    %v271 = vmul.f32 %v268, 1.442695
    %v272 = vpow.pop %v271
    %v273 = vsel %vm229, %v270, 0.0
    %v274 = vsel %vm229, %v272, 0.0
    %275 = vadd.xlane.f32.xlu0 %v273
    %v276 = vpop.xlane.xlu0 %275
    %277 = vadd.xlane.f32.xlu0 %v274
    %v278 = vpop.xlane.xlu0 %277
    %v279 = vsel %vm232, %v270, 0.0
    %v280 = vsel %vm232, %v272, 0.0
    %281 = vadd.xlane.f32.xlu0 %v279
    %v282 = vpop.xlane.xlu0 %281
    %283 = vadd.xlane.f32.xlu0 %v280
    %v284 = vpop.xlane.xlu0 %283
    %v285 = vsel %vm235, %v270, 0.0
    %v286 = vsel %vm235, %v272, 0.0
    %287 = vadd.xlane.f32.xlu0 %v285
    %v288 = vpop.xlane.xlu0 %287
    %289 = vadd.xlane.f32.xlu0 %v286
    %v290 = vpop.xlane.xlu0 %289
    %v291 = vsel %vm229, %v276, 0.0
    %v292 = vsel %vm229, %v278, 0.0
    %v293 = vsel %vm232, %v282, 0.0
    %v294 = vsel %vm232, %v284, 0.0
    %v295 = vadd.f32 %v291, %v293
    %v296 = vadd.f32 %v292, %v294
    %v297 = vsel %vm235, %v288, 0.0
    %v298 = vsel %vm235, %v290, 0.0
    %v299 = vadd.f32 %v295, %v297
    %v300 = vadd.f32 %v296, %v298
    %v301 = vsel %vm236, 0.0, 1.0
    %v302 = vadd.f32 %v299, %v301
    %v303 = vadd.f32 %v300, %v301
    %v304 = vrcp.pop %v302
    %v305 = vrcp.pop %v303
    %v306 = vmul.f32 %v270, %v304
    %v307 = vmul.f32 %v272, %v305
    %vm308 = vcmp.lt.s32.totalorder %v226, 3
    %v309 = vsel %vm308, %v217, 0.0
    %v310 = vsel %vm308, %v222, 0.0
    %v311 = vadd.f32 %v309, %v306
    %v312 = vadd.f32 %v310, %v307
    %313 = vst [vmem:[#allocation6] sm:$0xff] %v311
    %314 = vst [vmem:[#allocation6 + $0x8] sm:$0xff] %v312
    // Predicated region
    $region19: #{tpu_custom_call.1} parent=1 // pred_check
      _
    $region20: #{tpu_custom_call.1} parent=1 // pred_check_branch
      %316 = sbr.rel (0) target = $region22
    $region21: #{tpu_custom_call.1} parent=1 // pred_region
      %s318 = ssub.s32 256, 256
      %319 = vsyncadd [#allocation5], %s318
      %s320 = sshll.u32 [#allocation6], 4
      %s321 = int_to_ptr.vmem [resolvable:$true] %s320
      %326 = dma.vmem_to_hbm [thread:$0]  %s321, 256, %s2, [#allocation5], 128, 128, 8
    $region22: #{tpu_custom_call.1} parent=1 // pred_fallthru
      _
    // Predicated region
    $region23: #{tpu_custom_call.1} parent=1 // pred_check
      _
    $region24: #{tpu_custom_call.1} parent=1 // pred_check_branch
      %328 = sbr.rel (0) target = $region26
    $region25: #{tpu_custom_call.1} parent=1 // pred_region
      %329 = dma.done [#allocation5], 256
    $region26: #{tpu_custom_call.1} parent=1 // pred_fallthru
      _
    %330 = vsyncpa [#allocation4], 1
    %331 = vsyncpa [#allocation5], 1

</llo_original>
